<compile_context>
chip_gen: v7x
topology: tpu7x:2x2x1
jax: 0.10.0
libtpu: 0.0.40
codegen_flags: <defaults>
</compile_context>

<pallas_src>
import jax
import jax.numpy as jnp
from jax.experimental import pallas as pl
from jax.experimental.pallas import tpu as pltpu


def _pool_kernel(w_ref, x_ref, o_ref):
    """x_ref: (L, tr, H) VMEM block; w_ref: (L,) pre-softmaxed weights in SMEM.

    Weighted sum over the layer axis, accumulated in f32 vregs, written once.
    """
    num_layers = x_ref.shape[0]
    acc = w_ref[0] * x_ref[0].astype(jnp.float32)
    for l in range(1, num_layers):            # short unrolled loop; L is static
        acc = acc + w_ref[l] * x_ref[l].astype(jnp.float32)
    o_ref[...] = acc.astype(o_ref.dtype)


def _sublane_pack(dtype):
    """Rows per packed sublane group: 8 for f32, 16 for bf16, 32 for 8-bit."""
    return max(8, 32 // jnp.dtype(dtype).itemsize)


def _vmem_budget_bytes():
    """Generation-aware target for total live VMEM buffers."""
    try:
        cap = pltpu.get_tpu_info().vmem_capacity_bytes
    except Exception:
        cap = 64 << 20                        # conservative default (v7x-sized)
    if cap <= (64 << 20):                     # v7x: 64 MiB per TensorCore
        return 44 << 20
    return 100 << 20                          # v5e / v6e: 128 MiB physical


def _choose_row_tile(rows, num_layers, hidden, in_bytes, out_bytes, pack, budget):
    """Row-tile size from a VMEM byte budget (double-buffered x block + out block)."""
    per_row = hidden * (2 * num_layers * in_bytes + 2 * out_bytes)
    tr_budget = max(pack, (budget // per_row) // pack * pack)
    if tr_budget >= rows:
        # Everything fits in one tile; split into >= 2 tiles so both v7x
        # TensorCores get work (costs nothing on v5e/v6e).
        if rows >= 2 * pack:
            return pl.cdiv(pl.cdiv(rows, 2), pack) * pack
        return rows                           # full-extent block (always legal)
    return tr_budget


def layer_pooler_forward(layer_weights, x):
    """layer_weights: (L,) float; x: (L, B, S, H). Returns (B, S, H)."""
    L, B, S, H = x.shape
    rows = B * S
    x_flat = x.reshape(L, rows, H)            # no data movement; lane-dense last dim
    out_dtype = x.dtype

    in_bytes = jnp.dtype(x.dtype).itemsize
    out_bytes = jnp.dtype(out_dtype).itemsize
    pack = _sublane_pack(x.dtype)
    budget = _vmem_budget_bytes()
    tr = _choose_row_tile(rows, L, H, in_bytes, out_bytes, pack, budget)
    num_tiles = pl.cdiv(rows, tr)             # last block may be partial (masked)

    # softmax computed once, outside the kernel, in f32
    w_sm = jax.nn.softmax(layer_weights.astype(jnp.float32), axis=0)

    # live buffers: double-buffered (L, tr, H) x block + double-buffered (tr, H) out
    vmem_need = 2 * L * tr * H * in_bytes + 2 * tr * H * out_bytes
    vmem_limit = int(max(vmem_need + (4 << 20), 16 << 20))

    cost = pl.CostEstimate(
        flops=2 * L * rows * H,
        transcendentals=0,
        bytes_accessed=L * rows * H * in_bytes + rows * H * out_bytes,
    )

    out_flat = pl.pallas_call(
        _pool_kernel,
        out_shape=jax.ShapeDtypeStruct((rows, H), out_dtype),
        grid_spec=pltpu.PrefetchScalarGridSpec(
            num_scalar_prefetch=1,                              # w_sm -> SMEM
            grid=(num_tiles,),                                  # single parallel axis
            in_specs=[
                pl.BlockSpec((L, tr, H), lambda r, w: (0, r, 0)),  # all layers at once
            ],
            out_specs=pl.BlockSpec((tr, H), lambda r, w: (r, 0)),
            scratch_shapes=[],
        ),
        compiler_params=pltpu.CompilerParams(
            dimension_semantics=("parallel",),
            vmem_limit_bytes=vmem_limit,
        ),
        cost_estimate=cost,
    )(w_sm, x_flat)

    return out_flat.reshape(B, S, H)


def init_layer_weights(num_hidden_layers, pool_type):
    """Deterministic parameter init matching LayerPooler.__init__."""
    w = jnp.zeros((num_hidden_layers,), dtype=jnp.float32)
    if pool_type == "last":
        w = w.at[:-1].set(-3.0)
    elif pool_type == "first":
        w = w.at[1:].set(-1.0)
    elif pool_type == "mean":
        pass
    else:
        raise ValueError(f"unknown pool_type: {pool_type}")
    return w


if __name__ == "__main__":
    # small shapes: L layers of (batch, seq, hidden) activations
    L, B, S, H = 4, 2, 8, 128
    key = jax.random.PRNGKey(0)
    x = jax.random.normal(key, (L, B, S, H), dtype=jnp.float32)

    layer_weights = init_layer_weights(L, pool_type="last")
    w_sm = jax.nn.softmax(layer_weights, axis=0)[:, None, None, None]

    # f32 path (2 row tiles of 8 rows each -> exercises megacore-friendly split)
    out = jax.block_until_ready(layer_pooler_forward(layer_weights, x))
    ref = jnp.sum(w_sm * x, axis=0)
    assert out.shape == (B, S, H)
    assert jnp.allclose(out, ref, atol=1e-5, rtol=1e-5)

    # bf16 path (f32 vreg accumulation, single cast at the end)
    x_bf16 = x.astype(jnp.bfloat16)
    out_bf16 = jax.block_until_ready(layer_pooler_forward(layer_weights, x_bf16))
    ref_bf16 = jnp.sum(w_sm * x_bf16.astype(jnp.float32), axis=0).astype(jnp.bfloat16)
    assert out_bf16.shape == (B, S, H)
    assert jnp.allclose(out_bf16.astype(jnp.float32), ref_bf16.astype(jnp.float32),
                        atol=2e-2, rtol=2e-2)

    # ragged rows path (rows = 40 not a multiple of the 24-row tile ->
    # non-dividing last block, masked writeback, no jnp.pad / HBM copy)
    key2 = jax.random.PRNGKey(1)
    x_rag = jax.random.normal(key2, (L, 5, 8, H), dtype=jnp.float32)
    out_rag = jax.block_until_ready(layer_pooler_forward(layer_weights, x_rag))
    ref_rag = jnp.sum(w_sm * x_rag, axis=0)
    assert out_rag.shape == (5, 8, H)
    assert jnp.allclose(out_rag, ref_rag, atol=1e-5, rtol=1e-5)

    print("KERNEL_OK")
</pallas_src>

<mosaic_0001>
module attributes {stable_mosaic.version = 11 : i64} {
  func.func @_pool_kernel(%arg0: i32, %arg1: memref<4xf32, #tpu.memory_space<smem>>, %arg2: memref<4x8x128xf32, #tpu.memory_space<vmem>>, %arg3: memref<8x128xf32, #tpu.memory_space<vmem>>) attributes {dimension_semantics = [#tpu.dimension_semantics<parallel>], iteration_bounds = array<i64: 2>, scalar_prefetch = 1 : i64, scratch_operands = 0 : i64, tpu.core_type = #tpu.core_type<tc>, window_params = [{transform_indices = @transform_0, window_bounds = array<i64: 4, 8, 128>}, {transform_indices = @transform_1, window_bounds = array<i64: 8, 128>}]} {
    %c0 = arith.constant 0 : index
    %0 = memref.load %arg1[%c0] : memref<4xf32, #tpu.memory_space<smem>>
    %c0_0 = arith.constant 0 : index
    %c0_1 = arith.constant 0 : index
    %c0_2 = arith.constant 0 : index
    %1 = vector.load %arg2[%c0_0, %c0_1, %c0_2] : memref<4x8x128xf32, #tpu.memory_space<vmem>>, vector<1x8x128xf32>
    %2 = vector.shape_cast %1 : vector<1x8x128xf32> to vector<8x128xf32>
    %3 = vector.broadcast %0 : f32 to vector<8x128xf32>
    %4 = arith.mulf %3, %2 : vector<8x128xf32>
    %c1 = arith.constant 1 : index
    %5 = memref.load %arg1[%c1] : memref<4xf32, #tpu.memory_space<smem>>
    %c1_3 = arith.constant 1 : index
    %c0_4 = arith.constant 0 : index
    %c0_5 = arith.constant 0 : index
    %6 = vector.load %arg2[%c1_3, %c0_4, %c0_5] : memref<4x8x128xf32, #tpu.memory_space<vmem>>, vector<1x8x128xf32>
    %7 = vector.shape_cast %6 : vector<1x8x128xf32> to vector<8x128xf32>
    %8 = vector.broadcast %5 : f32 to vector<8x128xf32>
    %9 = arith.mulf %8, %7 : vector<8x128xf32>
    %10 = arith.addf %4, %9 : vector<8x128xf32>
    %c2 = arith.constant 2 : index
    %11 = memref.load %arg1[%c2] : memref<4xf32, #tpu.memory_space<smem>>
    %c2_6 = arith.constant 2 : index
    %c0_7 = arith.constant 0 : index
    %c0_8 = arith.constant 0 : index
    %12 = vector.load %arg2[%c2_6, %c0_7, %c0_8] : memref<4x8x128xf32, #tpu.memory_space<vmem>>, vector<1x8x128xf32>
    %13 = vector.shape_cast %12 : vector<1x8x128xf32> to vector<8x128xf32>
    %14 = vector.broadcast %11 : f32 to vector<8x128xf32>
    %15 = arith.mulf %14, %13 : vector<8x128xf32>
    %16 = arith.addf %10, %15 : vector<8x128xf32>
    %c3 = arith.constant 3 : index
    %17 = memref.load %arg1[%c3] : memref<4xf32, #tpu.memory_space<smem>>
    %c3_9 = arith.constant 3 : index
    %c0_10 = arith.constant 0 : index
    %c0_11 = arith.constant 0 : index
    %18 = vector.load %arg2[%c3_9, %c0_10, %c0_11] : memref<4x8x128xf32, #tpu.memory_space<vmem>>, vector<1x8x128xf32>
    %19 = vector.shape_cast %18 : vector<1x8x128xf32> to vector<8x128xf32>
    %20 = vector.broadcast %17 : f32 to vector<8x128xf32>
    %21 = arith.mulf %20, %19 : vector<8x128xf32>
    %22 = arith.addf %16, %21 : vector<8x128xf32>
    %c0_12 = arith.constant 0 : index
    %c0_13 = arith.constant 0 : index
    %23 = vector.load %arg3[%c0_12, %c0_13] : memref<8x128xf32, #tpu.memory_space<vmem>>, vector<8x128xf32>
    tpu.vector_store %arg3[%c0_12, %c0_13], %22 {strides = array<i32>} : memref<8x128xf32, #tpu.memory_space<vmem>>, vector<8x128xf32>,
    return
  }
  func.func @transform_0(%arg0: i32, %arg1: memref<4xf32, #tpu.memory_space<smem>>) -> (i32, i32, i32) {
    %c0_i32 = arith.constant 0 : i32
    %c0_i32_0 = arith.constant 0 : i32
    %c0_i32_1 = arith.constant 0 : i32
    return %c0_i32, %arg0, %c0_i32_0 : i32, i32, i32
  }
  func.func @transform_1(%arg0: i32, %arg1: memref<4xf32, #tpu.memory_space<smem>>) -> (i32, i32) {
    %c0_i32 = arith.constant 0 : i32
    %c0_i32_0 = arith.constant 0 : i32
    return %arg0, %c0_i32 : i32, i32
  }
}

</mosaic_0001>

<llo_original>
// kernel: tpu_custom_call.1
$region0: #{tpu_custom_call.1}
  #allocation0 [shape = 'u32[]', space=smem, size = 0x4, offset = 0x4, fixed_abs, tag = 'smem constant byte address 0x4 - core index']
  #allocation1 [shape = 'u32[144,128]{1,0:T(1,128)}', space=vmem, size = 0x12000, scoped, tag = 'internal scratch']
  #allocation2 [shape = 's32[1]{0}', space=sflag, size = 0x4, scoped, tag = 'scoped memory for tpu_custom_call.1']
  #allocation3 [shape = 'u8[512]{0}', space=smem, size = 0x200, scoped, tag = 'prefetched SMEM operand 0']
  %s0 = inlined_call_operand.hbm [shape: f32[4], index: 0, kind: input, shape index: {}]
  %s1 = inlined_call_operand.hbm [shape: f32[4,16,128], index: 1, kind: input, shape index: {}]
  %s2 = inlined_call_operand.hbm [shape: f32[16,128], index: 2, kind: output, shape index: {}]
  %s3 = sld [smem:[#allocation0]]
  $region41: #{tpu_custom_call.1} parent=0
    _
  %s5 = ssub.s32 1, %s3
  %s6 = scalar_select 0, %s5, %s3
  %8 = dma.hbm_to_smem %s0, 16, [#allocation3], [#allocation2]
  %9 = dma.done [#allocation2], 16
  %10 = sfence
  $region1: #{tpu_custom_call.1} parent=0
    #allocation4 [shape = 'u8[32768]{0}', space=vmem, size = 0x8000, scoped, tag = 'input window, operand 1']
    #allocation5 [shape = 's32[2]{0}', space=sflag, size = 0x8, scoped, tag = 'scoped memory for tpu_custom_call.1']
    #allocation6 [shape = 's32[2]{0}', space=sflag, size = 0x8, scoped, tag = 'scoped memory for tpu_custom_call.1']
    #allocation7 [shape = 'u8[8192]{0}', space=vmem, size = 0x2000, scoped, tag = 'output window, operand 0']
    %11 = vsyncpa [#allocation5], 0
    %s12 = scalar_lea.sflag [#allocation5], 1
    %13 = vsyncpa %s12, 0
    %14 = vsyncpa [#allocation6], 0
    %s15 = scalar_lea.sflag [#allocation6], 1
    %16 = vsyncpa %s15, 0
    loop: start=0, step=1, limit=4
    $region2: #{tpu_custom_call.1} parent=1 // loop_pre_header
      _
    $region3: #{tpu_custom_call.1} parent=1 // loop_header
      %s18 = sphi 0, %s22
      %p19 = scmp.ge.s32.totalorder %s18, 4
      %s28 = sphi 0, %s30
      %s31 = sphi 0, %s28
      %s32 = sphi 0, %s31
      %s48 = sphi 0, %s32
      %s54 = sphi 0, %s56
      %s57 = sphi 0, %s54
      %s58 = sphi 0, %s57
      %s74 = sphi 0, %s58
    $region4: #{tpu_custom_call.1} parent=1 // loop_header_branch
      %21 = sbr.rel (%p19) target = $region8
    $region5: #{tpu_custom_call.1} parent=1 // loop_body
      %s23 = ssub.s32 %s18, 1
      %s24 = ssub.s32 %s18, 2
      %s25 = sadd.s32 %s18, 1
      %s26 = ssub.s32 %s18, %s25
      %p27 = scmp.eq.s32.totalorder %s26, 0
      %s29 = sadd.s32 %s28, 1
      %s30 = scalar_select %p27, %s28, %s29
      %p33 = pneg %p27
      %p34 = scmp.eq.s32.totalorder %s18, 1
      %p35 = por %p33, %p34
      %p36 = scmp.ne.s32.totalorder %s28, %s31
      %p37 = scmp.eq.s32.totalorder %s18, 0
      %p38 = por %p36, %p37
      %p39 = scmp.ne.s32.totalorder %s28, %s31
      %p40 = scmp.eq.s32.totalorder %s23, 1
      %p41 = por %p39, %p40
      %p42 = scmp.ne.s32.totalorder %s31, %s32
      %p43 = scmp.eq.s32.totalorder %s23, 0
      %p44 = por %p42, %p43
      %p45 = scmp.ne.s32.totalorder %s31, %s32
      %p46 = scmp.eq.s32.totalorder %s24, 1
      %p47 = por %p45, %p46
      %p49 = scmp.ne.s32.totalorder %s32, %s48
      %p50 = scmp.eq.s32.totalorder %s24, 0
      %p51 = por %p49, %p50
      %s52 = ssub.s32 %s18, %s25
      %p53 = scmp.eq.s32.totalorder %s52, 0
      %s55 = sadd.s32 %s54, 1
      %s56 = scalar_select %p53, %s54, %s55
      %p59 = pneg %p53
      %p60 = scmp.eq.s32.totalorder %s18, 1
      %p61 = por %p59, %p60
      %p62 = scmp.ne.s32.totalorder %s54, %s57
      %p63 = scmp.eq.s32.totalorder %s18, 0
      %p64 = por %p62, %p63
      %p65 = scmp.ne.s32.totalorder %s54, %s57
      %p66 = scmp.eq.s32.totalorder %s23, 1
      %p67 = por %p65, %p66
      %p68 = scmp.ne.s32.totalorder %s57, %s58
      %p69 = scmp.eq.s32.totalorder %s23, 0
      %p70 = por %p68, %p69
      %p71 = scmp.ne.s32.totalorder %s57, %s58
      %p72 = scmp.eq.s32.totalorder %s24, 1
      %p73 = por %p71, %p72
      %p75 = scmp.ne.s32.totalorder %s58, %s74
      %p76 = scmp.eq.s32.totalorder %s24, 0
      %p77 = por %p75, %p76
      %p78 = scmp.le.s32.totalorder 1, %s18
      %p79 = scmp.lt.s32.totalorder %s18, 3
      %p80 = pnand %p78, %p79
      %p81 = pneg %p80
      // Predicated region
      $region9: #{tpu_custom_call.1} parent=5 // pred_check
        _
      $region10: #{tpu_custom_call.1} parent=5 // pred_check_branch
        %83 = sbr.rel (%p80) target = $region12
      $region11: #{tpu_custom_call.1} parent=5 // pred_region
        %s84 = ssub.s32 %s18, 1
      $region12: #{tpu_custom_call.1} parent=5 // pred_fallthru
        _
      %p85 = scmp.lt.s32.totalorder %s18, 2
      // Predicated region
      $region13: #{tpu_custom_call.1} parent=5 // pred_check
        %p86 = pneg %p85
      $region14: #{tpu_custom_call.1} parent=5 // pred_check_branch
        %88 = sbr.rel (%p86) target = $region16
      $region15: #{tpu_custom_call.1} parent=5 // pred_region
        // Predicated region
        $region17: #{tpu_custom_call.1} parent=15 // pred_check
          %p89 = pneg %p38
        $region18: #{tpu_custom_call.1} parent=15 // pred_check_branch
          %91 = sbr.rel (%p89) target = $region20
        $region19: #{tpu_custom_call.1} parent=15 // pred_region
          %s92 = sand.u32 %s28, 1
          %s93 = scalar_lea.sflag [#allocation5], %s92
          %s94 = sand.u32 %s28, 1
          %s95 = smul.addr %s94, 32
          %s96 = scalar_lea.vmem [#allocation4], %s95
          %s98 = ssub.s32 512, 512
          %99 = vsyncadd %s93, %s98
          %s100 = smul.addr %s18, 128
          %s101 = scalar_lea.hbm %s1, %s100
          %s102 = sshll.u32 %s96, 4
          %s103 = int_to_ptr.vmem [resolvable:$true] %s102
          %108 = dma.hbm_to_vmem [thread:$0]  %s101, 512, %s103, %s93, 256, 128, 8
        $region20: #{tpu_custom_call.1} parent=15 // pred_fallthru
          _
      $region16: #{tpu_custom_call.1} parent=5 // pred_fallthru
        _
      %p109 = scmp.le.s32.totalorder 1, %s18
      %p110 = scmp.lt.s32.totalorder %s18, 3
      %p111 = pnand %p109, %p110
      %p112 = pneg %p111
      // Predicated region
      $region21: #{tpu_custom_call.1} parent=5 // pred_check
        _
      $region22: #{tpu_custom_call.1} parent=5 // pred_check_branch
        %114 = sbr.rel (%p111) target = $region24
      $region23: #{tpu_custom_call.1} parent=5 // pred_region
        %s115 = ssub.s32 %s18, 1
        %s116 = sand.u32 %s31, 1
        %s117 = scalar_lea.sflag [#allocation5], %s116
        %s118 = sand.u32 %s31, 1
        %s119 = smul.addr %s118, 32
        %s120 = scalar_lea.vmem [#allocation4], %s119
        // Predicated region
        $region25: #{tpu_custom_call.1} parent=23 // pred_check
          %p121 = pneg %p44
        $region26: #{tpu_custom_call.1} parent=23 // pred_check_branch
          %123 = sbr.rel (%p121) target = $region28
        $region27: #{tpu_custom_call.1} parent=23 // pred_region
          %124 = dma.done %s117, 512
        $region28: #{tpu_custom_call.1} parent=23 // pred_fallthru
          _
        %s125 = sand.u32 %s31, 1
        %s126 = scalar_lea.sflag [#allocation5], %s125
        %s127 = sand.u32 %s31, 1
        %s128 = smul.addr %s127, 32
        %s129 = scalar_lea.vmem [#allocation4], %s128
        %p130 = pneg %p44
        %p131 = pneg %p41
        %p132 = pneg %p70
        %p133 = pneg %p67
        %s134 = sand.u32 %s57, 1
        %s135 = scalar_lea.sflag [#allocation6], %s134
        %s136 = sand.u32 %s57, 1
        %s137 = smul.addr %s136, 8
        %s138 = scalar_lea.vmem [#allocation7], %s137
        %s139 = sld [smem:[#allocation3]]
        %v140 = vld [vmem:[%s120] sm:$0xff]
        %v141 = vstv %s139
        %v142 = vmul.f32 %v141, %v140
        %s143 = sld [smem:[#allocation3 + $0x1]]
        %s144 = scalar_lea.vmem %s120, 8 [#allocation4]
        %v145 = vld [vmem:[%s144] sm:$0xff]
        %v146 = vstv %s143
        %v147 = vmul.f32 %v146, %v145
        %v148 = vadd.f32 %v142, %v147
        %s149 = sld [smem:[#allocation3 + $0x2]]
        %s150 = scalar_lea.vmem %s120, 16 [#allocation4]
        %v151 = vld [vmem:[%s150] sm:$0xff]
        %v152 = vstv %s149
        %v153 = vmul.f32 %v152, %v151
        %v154 = vadd.f32 %v148, %v153
        %s155 = sld [smem:[#allocation3 + $0x3]]
        %s156 = scalar_lea.vmem %s120, 24 [#allocation4]
        %v157 = vld [vmem:[%s156] sm:$0xff]
        %v158 = vstv %s155
        %v159 = vmul.f32 %v158, %v157
        %v160 = vadd.f32 %v154, %v159
        %161 = vst [vmem:[%s138] sm:$0xff] %v160
        %s162 = sand.u32 %s57, 1
        %s163 = scalar_lea.sflag [#allocation6], %s162
        %s164 = sand.u32 %s57, 1
        %s165 = smul.addr %s164, 8
        %s166 = scalar_lea.vmem [#allocation7], %s165
        // Predicated region
        $region29: #{tpu_custom_call.1} parent=23 // pred_check
          %p167 = pneg %p67
        $region30: #{tpu_custom_call.1} parent=23 // pred_check_branch
          %169 = sbr.rel (%p167) target = $region32
        $region31: #{tpu_custom_call.1} parent=23 // pred_region
          %s171 = ssub.s32 128, 128
          %172 = vsyncadd %s163, %s171
          %s173 = smul.addr %s23, 128
          %s174 = scalar_lea.hbm %s2, %s173
          %s176 = sshll.u32 %s166, 4
          %s177 = int_to_ptr.vmem [resolvable:$true] %s176
          %179 = dma.vmem_to_hbm [thread:$0]  %s177, 128, %s174, %s163
        $region32: #{tpu_custom_call.1} parent=23 // pred_fallthru
          _
      $region24: #{tpu_custom_call.1} parent=5 // pred_fallthru
        _
      %p180 = scmp.le.s32.totalorder 2, %s18
      // Predicated region
      $region33: #{tpu_custom_call.1} parent=5 // pred_check
        %p181 = pneg %p180
      $region34: #{tpu_custom_call.1} parent=5 // pred_check_branch
        %183 = sbr.rel (%p181) target = $region36
      $region35: #{tpu_custom_call.1} parent=5 // pred_region
        %s184 = ssub.s32 %s18, 2
        // Predicated region
        $region37: #{tpu_custom_call.1} parent=35 // pred_check
          %p185 = pneg %p73
        $region38: #{tpu_custom_call.1} parent=35 // pred_check_branch
          %187 = sbr.rel (%p185) target = $region40
        $region39: #{tpu_custom_call.1} parent=35 // pred_region
          %s188 = sand.u32 %s58, 1
          %s189 = scalar_lea.sflag [#allocation6], %s188
          %s190 = sand.u32 %s58, 1
          %s191 = smul.addr %s190, 8
          %s192 = scalar_lea.vmem [#allocation7], %s191
          %193 = dma.done %s189, 128
        $region40: #{tpu_custom_call.1} parent=35 // pred_fallthru
          _
      $region36: #{tpu_custom_call.1} parent=5 // pred_fallthru
        _
    $region6: #{tpu_custom_call.1} parent=1 // loop_footer
      %s22 = sadd.s32 1, %s18
    $region7: #{tpu_custom_call.1} parent=1 // loop_footer_branch
      %17 = sbr.rel target = $region3
    $region8: #{tpu_custom_call.1} parent=1 // loop_exit
      _
    %194 = vsyncpa [#allocation5], 1
    %s195 = scalar_lea.sflag [#allocation5], 1
    %196 = vsyncpa %s195, 1
    %197 = vsyncpa [#allocation6], 1
    %s198 = scalar_lea.sflag [#allocation6], 1
    %199 = vsyncpa %s198, 1

</llo_original>
